<compile_context>
chip_gen: v7x
topology: tpu7x:2x2x1
jax: 0.10.0
libtpu: 0.0.40
codegen_flags: <defaults>
</compile_context>

<pallas_src>
import math

import jax
import jax.numpy as jnp
from jax import lax
from jax.experimental import pallas as pl
from jax.experimental.pallas import tpu as pltpu


def _round_up(x, n):
    return ((x + n - 1) // n) * n


def _fourier_kernel(x_ref, w2_ref, bias_ref, out_ref):
    # x_ref   : (TM, dim)  VMEM, pipelined over the grid
    # w2_ref  : (F, dim)   VMEM, resident (constant index_map) = [waves; waves]
    # bias_ref: (1, F)     VMEM, resident = [0]*half + [pi/2]*half
    # out_ref : (TM, F)    VMEM -> sin(x @ w2.T + bias) == [sin(w) | cos(w)]
    phases = lax.dot_general(
        x_ref[...],
        w2_ref[...],
        dimension_numbers=(((1,), (1,)), ((), ())),  # contract dim with dim
        preferred_element_type=jnp.float32,
    )
    out_ref[...] = jnp.sin(phases + bias_ref[...]).astype(out_ref.dtype)


def fourier_layer(x, waves, *, block_m=8192, out_dtype=None):
    """x: (..., dim); waves: (F/2, dim) -> (..., F) = [sin(x@W.T) | cos(x@W.T)].

    out_dtype defaults to x.dtype to match the PyTorch module; pass
    jnp.bfloat16 to roughly halve output HBM traffic if downstream tolerates it.
    """
    *lead, dim = x.shape
    half, wdim = waves.shape
    assert wdim == dim, (wdim, dim)
    f = 2 * half
    if out_dtype is None:
        out_dtype = x.dtype

    m = int(math.prod(lead)) if lead else 1
    x2d = x.reshape(m, dim)

    # Doubled waves (resident, ~F*dim*4 bytes) and the sin-phase bias row.
    waves2 = jnp.concatenate([waves, waves], axis=0).astype(jnp.float32)  # (F, dim)
    bias = jnp.concatenate(
        [jnp.zeros((half,), jnp.float32), jnp.full((half,), jnp.pi / 2, jnp.float32)]
    ).reshape(1, f)

    # Tile over the flattened batch dim.  Large blocks amortize the ~0.35us
    # per-grid-step overhead; second-to-last block dim must be a multiple of 8.
    tm = min(block_m, _round_up(m, 8))
    # Prefer >= 2 grid steps for large M so v7x's two TensorCores both work.
    if m >= 1024 and pl.cdiv(m, tm) < 2:
        tm = _round_up(pl.cdiv(m, 2), 8)
    grid = (pl.cdiv(m, tm),)  # partial last block is masked on writeback

    itemsize_in = jnp.dtype(x.dtype).itemsize
    itemsize_out = jnp.dtype(out_dtype).itemsize

    # VMEM budget: x and out tiles are double-buffered; x's last dim is
    # lane-padded to 128.  Note F should be a multiple of 128 for a fully
    # lane-dense output store (true for the module's typical F, e.g. 128/256).
    lane = 128
    dim_pad = _round_up(dim, lane)
    f_pad = _round_up(f, lane)
    x_tile_bytes = tm * dim_pad * itemsize_in
    out_tile_bytes = tm * f_pad * itemsize_out
    resident_bytes = f_pad * dim_pad * 4 + f_pad * 4  # waves2 + bias (f32)
    vmem_limit = min(
        100 << 20,
        2 * (x_tile_bytes + out_tile_bytes) + resident_bytes + (4 << 20),
    )

    cost = pl.CostEstimate(
        flops=2 * m * dim * f,
        transcendentals=m * f,
        bytes_accessed=m * dim * itemsize_in
        + (f * dim + f) * 4
        + m * f * itemsize_out,
    )

    out2d = pl.pallas_call(
        _fourier_kernel,
        out_shape=jax.ShapeDtypeStruct((m, f), out_dtype),
        grid_spec=pl.GridSpec(
            grid=grid,
            in_specs=[
                pl.BlockSpec((tm, dim), lambda i: (i, 0)),   # x tile, pipelined
                pl.BlockSpec((f, dim), lambda i: (0, 0)),    # doubled waves, resident
                pl.BlockSpec((1, f), lambda i: (0, 0)),      # phase bias, resident
            ],
            out_specs=pl.BlockSpec((tm, f), lambda i: (i, 0)),
        ),
        compiler_params=pltpu.CompilerParams(
            dimension_semantics=("parallel",),  # megacore split on v7x
            vmem_limit_bytes=int(vmem_limit),
        ),
        cost_estimate=cost,
    )(x2d, waves2, bias)

    return out2d.reshape(*lead, f)


def fourier_layer_ref(x, waves):
    w = jnp.matmul(x, waves.T, precision=lax.Precision.HIGHEST)
    return jnp.concatenate([jnp.sin(w), jnp.cos(w)], axis=-1)


if __name__ == "__main__":
    # Small shapes consistent with the module: batch=2, seq=8, dim=32, F=128.
    dim = 32
    fourier_features_dim = 128
    frequency_range = 1.0

    key = jax.random.PRNGKey(0)
    kx, kw, kb = jax.random.split(key, 3)

    x = jax.random.normal(kx, (2, 8, dim), dtype=jnp.float32)
    # Deterministic in-script "buffer" init mirroring torch.randn(...) * range * pi.
    waves = (
        jax.random.normal(kw, (fourier_features_dim // 2, dim), dtype=jnp.float32)
        * frequency_range
        * jnp.pi
    )

    out = jax.block_until_ready(fourier_layer(x, waves))
    ref = fourier_layer_ref(x, waves)
    assert out.shape == (2, 8, fourier_features_dim), out.shape
    # cos(w) is computed as sin(w + pi/2) and the MXU/EUP paths differ slightly
    # from the XLA reference, so allow a small absolute tolerance.
    assert jnp.allclose(out, ref, atol=5e-4, rtol=0), float(
        jnp.max(jnp.abs(out - ref))
    )

    # Exercise the multi-block path with a ragged (non-divisible) M: this hits
    # the >=2-step grid split and the masked partial last block.
    x_big = jax.random.normal(kb, (3, 700, dim), dtype=jnp.float32)
    out_big = jax.block_until_ready(fourier_layer(x_big, waves))
    ref_big = fourier_layer_ref(x_big, waves)
    assert out_big.shape == (3, 700, fourier_features_dim), out_big.shape
    assert jnp.allclose(out_big, ref_big, atol=5e-4, rtol=0), float(
        jnp.max(jnp.abs(out_big - ref_big))
    )

    print("KERNEL_OK")
</pallas_src>

<mosaic_0001>
module attributes {stable_mosaic.version = 11 : i64} {
  func.func @_fourier_kernel(%arg0: i32, %arg1: memref<16x32xf32, #tpu.memory_space<vmem>>, %arg2: memref<128x32xf32, #tpu.memory_space<vmem>>, %arg3: memref<1x128xf32, #tpu.memory_space<vmem>>, %arg4: memref<16x128xf32, #tpu.memory_space<vmem>>) attributes {dimension_semantics = [#tpu.dimension_semantics<parallel>], iteration_bounds = array<i64: 1>, scalar_prefetch = 0 : i64, scratch_operands = 0 : i64, tpu.core_type = #tpu.core_type<tc>, window_params = [{transform_indices = @transform_0, window_bounds = array<i64: 16, 32>}, {pipeline_mode = #tpu.pipeline_mode<synchronous>, transform_indices = @transform_1, window_bounds = array<i64: 128, 32>}, {pipeline_mode = #tpu.pipeline_mode<synchronous>, transform_indices = @transform_2, window_bounds = array<i64: 1, 128>}, {transform_indices = @transform_3, window_bounds = array<i64: 16, 128>}]} {
    %c0 = arith.constant 0 : index
    %c0_0 = arith.constant 0 : index
    %0 = vector.load %arg1[%c0, %c0_0] : memref<16x32xf32, #tpu.memory_space<vmem>>, vector<16x32xf32>
    %c0_1 = arith.constant 0 : index
    %c0_2 = arith.constant 0 : index
    %1 = vector.load %arg2[%c0_1, %c0_2] : memref<128x32xf32, #tpu.memory_space<vmem>>, vector<128x32xf32>
    %cst = arith.constant dense<0.000000e+00> : vector<16x128xf32>
    %2 = tpu.matmul %0, %1, %cst {dimension_numbers = #tpu.dot_dimension_numbers<[1], [1], [0], [0], [0, 0, 1, 0], [], []>} : vector<16x32xf32>, vector<128x32xf32>, vector<16x128xf32> -> vector<16x128xf32>
    %c0_3 = arith.constant 0 : index
    %c0_4 = arith.constant 0 : index
    %3 = vector.load %arg3[%c0_3, %c0_4] : memref<1x128xf32, #tpu.memory_space<vmem>>, vector<1x128xf32>
    %4 = vector.broadcast %3 : vector<1x128xf32> to vector<16x128xf32>
    %5 = arith.addf %2, %4 : vector<16x128xf32>
    %6 = math.sin %5 : vector<16x128xf32>
    %c0_5 = arith.constant 0 : index
    %c0_6 = arith.constant 0 : index
    %7 = vector.load %arg4[%c0_5, %c0_6] : memref<16x128xf32, #tpu.memory_space<vmem>>, vector<16x128xf32>
    tpu.vector_store %arg4[%c0_5, %c0_6], %6 {strides = array<i32>} : memref<16x128xf32, #tpu.memory_space<vmem>>, vector<16x128xf32>,
    return
  }
  func.func @transform_0(%arg0: i32) -> (i32, i32) {
    %c0_i32 = arith.constant 0 : i32
    %c0_i32_0 = arith.constant 0 : i32
    return %arg0, %c0_i32 : i32, i32
  }
  func.func @transform_1(%arg0: i32) -> (i32, i32) {
    %c0_i32 = arith.constant 0 : i32
    %c0_i32_0 = arith.constant 0 : i32
    %c0_i32_1 = arith.constant 0 : i32
    return %c0_i32, %c0_i32_0 : i32, i32
  }
  func.func @transform_2(%arg0: i32) -> (i32, i32) {
    %c0_i32 = arith.constant 0 : i32
    %c0_i32_0 = arith.constant 0 : i32
    %c0_i32_1 = arith.constant 0 : i32
    return %c0_i32, %c0_i32_0 : i32, i32
  }
  func.func @transform_3(%arg0: i32) -> (i32, i32) {
    %c0_i32 = arith.constant 0 : i32
    %c0_i32_0 = arith.constant 0 : i32
    return %arg0, %c0_i32 : i32, i32
  }
}

</mosaic_0001>

<llo_original>
// kernel: tpu_custom_call.1
$region0: #{tpu_custom_call.1}
  #allocation0 [shape = 'u32[]', space=smem, size = 0x4, offset = 0x4, fixed_abs, tag = 'smem constant byte address 0x4 - core index']
  #allocation1 [shape = 'u32[144,128]{1,0:T(1,128)}', space=vmem, size = 0x12000, scoped, tag = 'internal scratch']
  %s0 = inlined_call_operand.vmem [shape: f32[16,32], index: 0, kind: input, shape index: {}]
  %s1 = inlined_call_operand.vmem [shape: f32[128,32], index: 1, kind: input, shape index: {}]
  %s2 = inlined_call_operand.vmem [shape: f32[1,128], index: 2, kind: input, shape index: {}]
  %s3 = inlined_call_operand.hbm [shape: f32[16,128], index: 3, kind: output, shape index: {}]
  %s4 = sld [smem:[#allocation0]]
  $region22: #{tpu_custom_call.1} parent=0
    _
  %s6 = ssub.s32 1, %s4
  %s7 = scalar_select 0, %s6, %s4
  $region1: #{tpu_custom_call.1} parent=0
    #allocation2 [shape = 'u8[8192]{0}', space=vmem, size = 0x2000, scoped, tag = 'output window, operand 0, single buffered']
    #allocation3 [shape = 's32[1]{0}', space=sflag, size = 0x4, scoped, tag = 'scoped memory for tpu_custom_call.1']
    %8 = vsyncpa [#allocation3], 0
    // Predicated region
    $region2: #{tpu_custom_call.1} parent=1 // pred_check
      _
    $region3: #{tpu_custom_call.1} parent=1 // pred_check_branch
      %10 = sbr.rel (0) target = $region5
    $region4: #{tpu_custom_call.1} parent=1 // pred_region
      _
    $region5: #{tpu_custom_call.1} parent=1 // pred_fallthru
      _
    // Predicated region
    $region6: #{tpu_custom_call.1} parent=1 // pred_check
      _
    $region7: #{tpu_custom_call.1} parent=1 // pred_check_branch
      %12 = sbr.rel (0) target = $region9
    $region8: #{tpu_custom_call.1} parent=1 // pred_region
      _
    $region9: #{tpu_custom_call.1} parent=1 // pred_fallthru
      _
    // Predicated region
    $region10: #{tpu_custom_call.1} parent=1 // pred_check
      _
    $region11: #{tpu_custom_call.1} parent=1 // pred_check_branch
      %14 = sbr.rel (0) target = $region13
    $region12: #{tpu_custom_call.1} parent=1 // pred_region
      _
    $region13: #{tpu_custom_call.1} parent=1 // pred_fallthru
      _
    %v15 = vld [vmem:[%s0] sm:$0xff]
    %v16 = vld [vmem:[%s0 + $0x8] sm:$0xff]
    %v17 = vld [vmem:[%s1] sm:$0xff]
    %v18 = vld [vmem:[%s1 + $0x8] sm:$0xff]
    %v19 = vld [vmem:[%s1 + $0x10] sm:$0xff]
    %v20 = vld [vmem:[%s1 + $0x18] sm:$0xff]
    %v21 = vld [vmem:[%s1 + $0x20] sm:$0xff]
    %v22 = vld [vmem:[%s1 + $0x28] sm:$0xff]
    %v23 = vld [vmem:[%s1 + $0x30] sm:$0xff]
    %v24 = vld [vmem:[%s1 + $0x38] sm:$0xff]
    %v25 = vld [vmem:[%s1 + $0x40] sm:$0xff]
    %v26 = vld [vmem:[%s1 + $0x48] sm:$0xff]
    %v27 = vld [vmem:[%s1 + $0x50] sm:$0xff]
    %v28 = vld [vmem:[%s1 + $0x58] sm:$0xff]
    %v29 = vld [vmem:[%s1 + $0x60] sm:$0xff]
    %v30 = vld [vmem:[%s1 + $0x68] sm:$0xff]
    %v31 = vld [vmem:[%s1 + $0x70] sm:$0xff]
    %v32 = vld [vmem:[%s1 + $0x78] sm:$0xff]
    %v33 = vld [vmem:[%s2] sm:$0x1]
    %v35 = vlaneseq
    %v36 = vshrl.u32 %v35, 7
    %v37 = vsub.s32 0, %v36
    %v38 = vrot.slane %v33, %v37
    %vm40 = vcmask 261120
    %v42 = vsel %vm40, %v15, 0
    %v45 = vsel %vm40, %v16, 0
    %v48 = vsel %vm40, %v17, 0
    %v51 = vsel %vm40, %v18, 0
    %v54 = vsel %vm40, %v19, 0
    %v57 = vsel %vm40, %v20, 0
    %v60 = vsel %vm40, %v21, 0
    %v63 = vsel %vm40, %v22, 0
    %v66 = vsel %vm40, %v23, 0
    %v69 = vsel %vm40, %v24, 0
    %v72 = vsel %vm40, %v25, 0
    %v75 = vsel %vm40, %v26, 0
    %v78 = vsel %vm40, %v27, 0
    %v81 = vsel %vm40, %v28, 0
    %v84 = vsel %vm40, %v29, 0
    %v87 = vsel %vm40, %v30, 0
    %v90 = vsel %vm40, %v31, 0
    %v93 = vsel %vm40, %v32, 0
    %95 = vmatprep.subr.mxu0 0.0
    %96 = vmatpush1.xpose.msra.mxu0 %v48
    %97 = vmatprep.subr.mxu0 0.0
    %98 = vmatpush1.xpose.msra.mxu0 %v51
    %99 = vmatprep.subr.mxu0 0.0
    %100 = vmatpush1.xpose.msra.mxu0 %v54
    %101 = vmatprep.subr.mxu0 0.0
    %102 = vmatpush1.xpose.msra.mxu0 %v57
    %103 = vmatprep.subr.mxu0 0.0
    %104 = vmatpush1.xpose.msra.mxu0 %v60
    %105 = vmatprep.subr.mxu0 0.0
    %106 = vmatpush1.xpose.msra.mxu0 %v63
    %107 = vmatprep.subr.mxu0 0.0
    %108 = vmatpush1.xpose.msra.mxu0 %v66
    %109 = vmatprep.subr.mxu0 0.0
    %110 = vmatpush1.xpose.msra.mxu0 %v69
    %111 = vmatprep.subr.mxu0 0.0
    %112 = vmatpush1.xpose.msra.mxu0 %v72
    %113 = vmatprep.subr.mxu0 0.0
    %114 = vmatpush1.xpose.msra.mxu0 %v75
    %115 = vmatprep.subr.mxu0 0.0
    %116 = vmatpush1.xpose.msra.mxu0 %v78
    %117 = vmatprep.subr.mxu0 0.0
    %118 = vmatpush1.xpose.msra.mxu0 %v81
    %119 = vmatprep.subr.mxu0 0.0
    %120 = vmatpush1.xpose.msra.mxu0 %v84
    %121 = vmatprep.subr.mxu0 0.0
    %122 = vmatpush1.xpose.msra.mxu0 %v87
    %123 = vmatprep.subr.mxu0 0.0
    %124 = vmatpush1.xpose.msra.mxu0 %v90
    %125 = vmatprep.subr.mxu0 0.0
    %126 = vmatpush1.xpose.msra.mxu0 %v93
    %127 = vmatprep.subr.mxu0 0.0
    %128 = vmatpush1.xpose.msra.mxu0 0.0
    %129 = vmatprep.subr.mxu0 0.0
    %130 = vmatpush1.xpose.msra.mxu0 0.0
    %131 = vmatprep.subr.mxu0 0.0
    %132 = vmatpush1.xpose.msra.mxu0 0.0
    %133 = vmatprep.subr.mxu0 0.0
    %134 = vmatpush1.xpose.msra.mxu0 0.0
    %135 = vmatprep.subr.mxu0 0.0
    %136 = vmatpush1.xpose.msra.mxu0 0.0
    %137 = vmatprep.subr.mxu0 0.0
    %138 = vmatpush1.xpose.msra.mxu0 0.0
    %139 = vmatprep.subr.mxu0 0.0
    %140 = vmatpush1.xpose.msra.mxu0 0.0
    %141 = vmatprep.subr.mxu0 0.0
    %142 = vmatpush1.xpose.msra.mxu0 0.0
    %143 = vmatprep.subr.mxu0 0.0
    %144 = vmatpush1.xpose.msra.mxu0 0.0
    %145 = vmatprep.subr.mxu0 0.0
    %146 = vmatpush1.xpose.msra.mxu0 0.0
    %147 = vmatprep.subr.mxu0 0.0
    %148 = vmatpush1.xpose.msra.mxu0 0.0
    %149 = vmatprep.subr.mxu0 0.0
    %150 = vmatpush1.xpose.msra.mxu0 0.0
    %151 = vmatprep.subr.mxu0 0.0
    %152 = vmatpush1.xpose.msra.mxu0 0.0
    %153 = vmatprep.subr.mxu0 0.0
    %154 = vmatpush1.xpose.msra.mxu0 0.0
    %155 = vmatprep.subr.mxu0 0.0
    %156 = vmatpush1.xpose.msra.mxu0 0.0
    %157 = vmatprep.subr.mxu0 0.0
    %158 = vmatpush1.xpose.msra.mxu0 0.0
    %159 = vmatprep.mubr.f32.mxu0 0.0
    %160 = vmatmul.mubr.f32.gmra.mrb[0].mxu0 %v42
    %v161 = vpop.f32.mrb[0].mxu0
    %v162 = vadd.f32 %v38, %v161
    %v163 = vpop.f32.mrb[0].mxu0
    %164 = vmatprep.mubr.f32.mxu0 0.0
    %165 = vmatmul.mubr.f32.gmra.mrb[0].mxu0 %v45
    %v166 = vpop.f32.mrb[0].mxu0
    %v167 = vadd.f32 %v38, %v166
    %v168 = vpop.f32.mrb[0].mxu0
    %169 = vdwg.mxu0
    %v170 = vand.u32 2147483647, %v162
    %vm171 = vcmp.le.f32.partialorder %v170, 0.7853982
    %vm172 = vcmp.lt.s32.totalorder %v162, 0
    %v173 = vand.u32 %v162, 2139095040
    %v174 = vshrl.u32 %v173, 23
    %v175 = vsub.s32 %v174, 127
    %v176 = vand.u32 2147483647, %v162
    %v177 = vand.u32 %v176, 8388607
    %v178 = vor.u32 %v177, 8388608
    %v179 = vsub.s32 0, %v178
    %v180 = vadd.s32 %v175, 1
    %vm181 = vcmp.gt.s32.totalorder %v180, 0
    %v182 = vsel %vm181, %v180, 0
    %v183 = vshrl.u32 %v182, 5
    %v184 = vand.u32 %v182, 31
    %v185 = vsub.s32 32, %v184
    %v186 = vshrl.u32 683565275, %v185
    %v187 = vshll.u32 683565275, %v184
    %v188 = vshrl.u32 2475754826, %v185
    %v189 = vor.u32 %v187, %v188
    %v190 = vshll.u32 2475754826, %v184
    %v191 = vshrl.u32 2131351028, %v185
    %v192 = vor.u32 %v190, %v191
    %v193 = vshll.u32 2131351028, %v184
    %v194 = vshrl.u32 2102212464, %v185
    %v195 = vor.u32 %v193, %v194
    %v196 = vshll.u32 2102212464, %v184
    %v197 = vshrl.u32 920167782, %v185
    %v198 = vor.u32 %v196, %v197
    %v199 = vshll.u32 920167782, %v184
    %v200 = vshrl.u32 1326507024, %v185
    %v201 = vor.u32 %v199, %v200
    %vm202 = vcmp.lt.s32.totalorder %v183, 1
    %vm203 = vcmp.lt.s32.totalorder %v183, 2
    %vm204 = vcmp.lt.s32.totalorder %v183, 3
    %vm205 = vcmp.lt.s32.totalorder %v183, 4
    %v206 = vsel %vm202, %v186, %v189
    %v207 = vsel %vm205, %v195, 2102212464
    %v208 = vsel %vm204, %v192, %v207
    %v209 = vsel %vm203, %v206, %v208
    %v210 = vsel %vm202, %v189, %v192
    %v211 = vsel %vm205, %v198, 920167782
    %v212 = vsel %vm204, %v195, %v211
    %v213 = vsel %vm203, %v210, %v212
    %v214 = vsel %vm202, %v192, %v195
    %v215 = vsel %vm205, %v201, 1326507024
    %v216 = vsel %vm204, %v198, %v215
    %v217 = vsel %vm203, %v214, %v216
    %v218 = vshll.u32 %v178, 8
    %v219 = vmul.u32.u64.compose %v218, %v217
    %v220 = vextract.low.u32 %v219
    %v221 = vextract.high.u32 %v219
    %v222 = vmul.u32.u64.compose %v218, %v213
    %v223 = vextract.low.u32 %v222
    %v224 = vextract.high.u32 %v222
    %v225 = vmul.u32 %v218, %v209
    %v226 = vadd.s32 %v221, %v223
    %vm227 = vc.u32 %v221, %v223
    %v228 = vadd.s32 %v224, 1
    %v229 = vsel %vm227, %v228, %v224
    %v230 = vadd.s32 %v225, %v229
    %v231 = vadd.s32 %v230, 536870912
    %v232 = vshrl.u32 %v231, 30
    %v233 = vshll.u32 %v232, 30
    %v234 = vsub.s32 %v230, %v233
    %vm235 = vcmp.lt.s32.totalorder %v234, 0
    %v236 = vsub.s32 0, %v234
    %v237 = vsel %vm235, %v236, %v234
    %v238 = vclz %v237
    %v239 = vsub.s32 %v238, 2
    %vm240 = vcmp.gt.s32.totalorder 0, %v239
    %v241 = vsel %vm240, 0, %v239
    %v242 = vsub.s32 32, %v241
    %v243 = vshll.u32 %v234, %v241
    %v244 = vshrl.u32 %v226, %v242
    %v245 = vor.u32 %v243, %v244
    %v246 = vsub.s32 4294967266, %v241
    %v247 = vadd.s32 %v246, 127
    %v248 = vshll.u32 %v247, 23
    %v249 = vor.u32 4788187, %v248
    %v250 = vand.u32 2147483647, %v249
    %v252 = vcvt.s32.f32 %v245
    %v253 = vmul.f32 %v252, %v250
    %v254 = vxor.u32 %v253, 2147483648
    %v255 = vsel %vm172, %v254, %v253
    %v256 = vsub.s32 4, %v232
    %v257 = vsel %vm172, %v256, %v232
    %v258 = vsel %vm171, %v162, %v255
    %v259 = vsel %vm171, 0, %v257
    %v260 = vcosq.f32.pop %v258
    %v261 = vsinq.f32.pop %v258
    %vm262 = vweird.f32 %v162
    %v263 = vadd.s32 %v259, 3
    %v264 = vand.u32 %v263, 3
    %vm265 = vcmp.lt.s32.totalorder %v264, 2
    %vm266 = vcmp.eq.s32.totalorder %v264, 0
    %v267 = vxor.u32 %v261, 2147483648
    %v268 = vsel %vm266, %v260, %v267
    %vm269 = vcmp.eq.s32.totalorder %v264, 2
    %v270 = vxor.u32 %v260, 2147483648
    %v271 = vsel %vm269, %v270, %v261
    %v272 = vsel %vm265, %v268, %v271
    %v273 = vsel %vm262, nan, %v272
    %v274 = vand.u32 2147483647, %v167
    %vm275 = vcmp.le.f32.partialorder %v274, 0.7853982
    %vm276 = vcmp.lt.s32.totalorder %v167, 0
    %v277 = vand.u32 %v167, 2139095040
    %v278 = vshrl.u32 %v277, 23
    %v279 = vsub.s32 %v278, 127
    %v280 = vand.u32 2147483647, %v167
    %v281 = vand.u32 %v280, 8388607
    %v282 = vor.u32 %v281, 8388608
    %v283 = vsub.s32 0, %v282
    %v284 = vadd.s32 %v279, 1
    %vm285 = vcmp.gt.s32.totalorder %v284, 0
    %v286 = vsel %vm285, %v284, 0
    %v287 = vshrl.u32 %v286, 5
    %v288 = vand.u32 %v286, 31
    %v289 = vsub.s32 32, %v288
    %v290 = vshrl.u32 683565275, %v289
    %v291 = vshll.u32 683565275, %v288
    %v292 = vshrl.u32 2475754826, %v289
    %v293 = vor.u32 %v291, %v292
    %v294 = vshll.u32 2475754826, %v288
    %v295 = vshrl.u32 2131351028, %v289
    %v296 = vor.u32 %v294, %v295
    %v297 = vshll.u32 2131351028, %v288
    %v298 = vshrl.u32 2102212464, %v289
    %v299 = vor.u32 %v297, %v298
    %v300 = vshll.u32 2102212464, %v288
    %v301 = vshrl.u32 920167782, %v289
    %v302 = vor.u32 %v300, %v301
    %v303 = vshll.u32 920167782, %v288
    %v304 = vshrl.u32 1326507024, %v289
    %v305 = vor.u32 %v303, %v304
    %vm306 = vcmp.lt.s32.totalorder %v287, 1
    %vm307 = vcmp.lt.s32.totalorder %v287, 2
    %vm308 = vcmp.lt.s32.totalorder %v287, 3
    %vm309 = vcmp.lt.s32.totalorder %v287, 4
    %v310 = vsel %vm306, %v290, %v293
    %v311 = vsel %vm309, %v299, 2102212464
    %v312 = vsel %vm308, %v296, %v311
    %v313 = vsel %vm307, %v310, %v312
    %v314 = vsel %vm306, %v293, %v296
    %v315 = vsel %vm309, %v302, 920167782
    %v316 = vsel %vm308, %v299, %v315
    %v317 = vsel %vm307, %v314, %v316
    %v318 = vsel %vm306, %v296, %v299
    %v319 = vsel %vm309, %v305, 1326507024
    %v320 = vsel %vm308, %v302, %v319
    %v321 = vsel %vm307, %v318, %v320
    %v322 = vshll.u32 %v282, 8
    %v323 = vmul.u32.u64.compose %v322, %v321
    %v324 = vextract.low.u32 %v323
    %v325 = vextract.high.u32 %v323
    %v326 = vmul.u32.u64.compose %v322, %v317
    %v327 = vextract.low.u32 %v326
    %v328 = vextract.high.u32 %v326
    %v329 = vmul.u32 %v322, %v313
    %v330 = vadd.s32 %v325, %v327
    %vm331 = vc.u32 %v325, %v327
    %v332 = vadd.s32 %v328, 1
    %v333 = vsel %vm331, %v332, %v328
    %v334 = vadd.s32 %v329, %v333
    %v335 = vadd.s32 %v334, 536870912
    %v336 = vshrl.u32 %v335, 30
    %v337 = vshll.u32 %v336, 30
    %v338 = vsub.s32 %v334, %v337
    %vm339 = vcmp.lt.s32.totalorder %v338, 0
    %v340 = vsub.s32 0, %v338
    %v341 = vsel %vm339, %v340, %v338
    %v342 = vclz %v341
    %v343 = vsub.s32 %v342, 2
    %vm344 = vcmp.gt.s32.totalorder 0, %v343
    %v345 = vsel %vm344, 0, %v343
    %v346 = vsub.s32 32, %v345
    %v347 = vshll.u32 %v338, %v345
    %v348 = vshrl.u32 %v330, %v346
    %v349 = vor.u32 %v347, %v348
    %v350 = vsub.s32 4294967266, %v345
    %v351 = vadd.s32 %v350, 127
    %v352 = vshll.u32 %v351, 23
    %v353 = vor.u32 4788187, %v352
    %v354 = vand.u32 2147483647, %v353
    %v356 = vcvt.s32.f32 %v349
    %v357 = vmul.f32 %v356, %v354
    %v358 = vxor.u32 %v357, 2147483648
    %v359 = vsel %vm276, %v358, %v357
    %v360 = vsub.s32 4, %v336
    %v361 = vsel %vm276, %v360, %v336
    %v362 = vsel %vm275, %v167, %v359
    %v363 = vsel %vm275, 0, %v361
    %v364 = vcosq.f32.pop %v362
    %v365 = vsinq.f32.pop %v362
    %vm366 = vweird.f32 %v167
    %v367 = vadd.s32 %v363, 3
    %v368 = vand.u32 %v367, 3
    %vm369 = vcmp.lt.s32.totalorder %v368, 2
    %vm370 = vcmp.eq.s32.totalorder %v368, 0
    %v371 = vxor.u32 %v365, 2147483648
    %v372 = vsel %vm370, %v364, %v371
    %vm373 = vcmp.eq.s32.totalorder %v368, 2
    %v374 = vxor.u32 %v364, 2147483648
    %v375 = vsel %vm373, %v374, %v365
    %v376 = vsel %vm369, %v372, %v375
    %v377 = vsel %vm366, nan, %v376
    %378 = vst [vmem:[#allocation2] sm:$0xff] %v273
    %379 = vst [vmem:[#allocation2 + $0x8] sm:$0xff] %v377
    // Predicated region
    $region14: #{tpu_custom_call.1} parent=1 // pred_check
      _
    $region15: #{tpu_custom_call.1} parent=1 // pred_check_branch
      %381 = sbr.rel (0) target = $region17
    $region16: #{tpu_custom_call.1} parent=1 // pred_region
      %s383 = ssub.s32 256, 256
      %384 = vsyncadd [#allocation3], %s383
      %s385 = sshll.u32 [#allocation2], 4
      %s386 = int_to_ptr.vmem [resolvable:$true] %s385
      %391 = dma.vmem_to_hbm [thread:$0]  %s386, 256, %s3, [#allocation3], 128, 128, 8
    $region17: #{tpu_custom_call.1} parent=1 // pred_fallthru
      _
    // Predicated region
    $region18: #{tpu_custom_call.1} parent=1 // pred_check
      _
    $region19: #{tpu_custom_call.1} parent=1 // pred_check_branch
      %393 = sbr.rel (0) target = $region21
    $region20: #{tpu_custom_call.1} parent=1 // pred_region
      %394 = dma.done [#allocation3], 256
    $region21: #{tpu_custom_call.1} parent=1 // pred_fallthru
      _
    %395 = vsyncpa [#allocation3], 1

</llo_original>
